<compile_context>
chip_gen: v6e
topology: v6e:2x2x1
jax: 0.10.0
libtpu: 0.0.40
codegen_flags: <defaults>
</compile_context>

<pallas_src>
import jax
import jax.numpy as jnp
from jax.experimental import pallas as pl
from jax.experimental.pallas import tpu as pltpu

# ---------------- config ----------------
B = 2            # batch
N = 8            # set size n (x is [B, n, n], set_channels == n)
LATENT = 16      # latent_dim
HIDDEN = 32      # hidden
HID_INIT = 32    # hidden_initial
HID_FINAL = 32   # hidden_final
MAX_N = 8        # max_n (true output feature dim)
OUT_PAD = 128    # lane-padded output feature dim (unmasked stores)

# Row offsets of each segment inside the packed weight slab.  Every segment
# start is a multiple of 8 so static ref slices stay sublane-tile aligned.
R_WCAT = 0                      # (N+LATENT, HID_INIT)  = (24, 32)
R_WIF = 24                      # (HID_INIT, HIDDEN)    = (32, 32)
R_WD0 = 56                      # (HIDDEN, HIDDEN)
R_WD1 = 88                      # (HIDDEN, HIDDEN)
R_WF0 = 120                     # (HIDDEN, HID_FINAL)
R_WF1 = 152                     # (HID_FINAL, OUT_PAD)  = (32, 128)
R_BIAS = 184                    # 6 bias rows packed into one (8, 128) tile
SLAB_ROWS = 192                 # total: 192 x 128 x 4B = 96 KiB


# ---------------- kernel ----------------
def decoder_kernel(x_ref, w_ref, o_ref):
    xin = x_ref[...]                                    # (rows, N + LATENT)

    # All biases live in one (8,128) tile; slice out each row.
    b = w_ref[R_BIAS:R_BIAS + 8, :]                     # (8, 128)
    bcat = b[0:1, 0:HID_INIT]
    bif = b[1:2, 0:HIDDEN]
    bd0 = b[2:3, 0:HIDDEN]
    bd1 = b[3:4, 0:HIDDEN]
    bf0 = b[4:5, 0:HID_FINAL]
    bf1p = b[5:6, :]                                    # (1, 128)

    # ---- initial MLP (2 layers); x / latent matmuls fused via concat weight ----
    h = jnp.dot(xin, w_ref[R_WCAT:R_WCAT + N + LATENT, 0:HID_INIT],
                preferred_element_type=jnp.float32) + bcat
    h = jnp.dot(jnp.maximum(h, 0.0), w_ref[R_WIF:R_WIF + HID_INIT, 0:HIDDEN],
                preferred_element_type=jnp.float32) + bif
    h = jnp.maximum(h, 0.0)                             # outer F.relu in forward

    # ---- decoder Linear layers: relu + residual (use_bn=False, res=True) ----
    out = jnp.maximum(
        jnp.dot(h, w_ref[R_WD0:R_WD0 + HIDDEN, 0:HIDDEN],
                preferred_element_type=jnp.float32) + bd0, 0.0)
    h = out + h
    out = jnp.maximum(
        jnp.dot(h, w_ref[R_WD1:R_WD1 + HIDDEN, 0:HIDDEN],
                preferred_element_type=jnp.float32) + bd1, 0.0)
    h = out + h

    # ---- final MLP (2 layers), output padded to 128 lanes (unmasked store) ----
    f = jnp.maximum(
        jnp.dot(h, w_ref[R_WF0:R_WF0 + HIDDEN, 0:HID_FINAL],
                preferred_element_type=jnp.float32) + bf0, 0.0)
    o_ref[...] = jnp.dot(f, w_ref[R_WF1:R_WF1 + HID_FINAL, :],
                         preferred_element_type=jnp.float32) + bf1p


# ---------------- parameters (deterministic, in-script) ----------------
def init_params(key):
    def linear(key, din, dout):
        kw, kb = jax.random.split(key)
        scale = 1.0 / jnp.sqrt(jnp.float32(din))
        w = jax.random.uniform(kw, (din, dout), jnp.float32, -scale, scale)
        b = jax.random.uniform(kb, (1, dout), jnp.float32, -scale, scale)
        return w, b

    ks = jax.random.split(key, 8)
    p = {}
    p["wi0"], p["bi0"] = linear(ks[0], N, HID_INIT)        # initial_mlp.lin1
    p["wl"],  p["bl"]  = linear(ks[1], LATENT, HID_INIT)   # initial_mlp latent proj
    p["wif"], p["bif"] = linear(ks[2], HID_INIT, HIDDEN)   # initial_mlp.lin_final
    p["wd0"], p["bd0"] = linear(ks[3], HIDDEN, HIDDEN)     # decoder_layers[0]
    p["wd1"], p["bd1"] = linear(ks[4], HIDDEN, HIDDEN)     # decoder_layers[1]
    p["wf0"], p["bf0"] = linear(ks[5], HIDDEN, HID_FINAL)  # final_mlp.lin1
    p["wf1"], p["bf1"] = linear(ks[6], HID_FINAL, MAX_N)   # final_mlp.lin_final
    return p


def pack_params(p):
    """Hoisted, once-per-model: pack all weights/biases into one (192,128) slab.

    Includes the constant transforms: [Wi0;Wl] concat, bi0+bl fusion, and
    zero-padding of the final projection to 128 output lanes.
    """
    slab = jnp.zeros((SLAB_ROWS, OUT_PAD), jnp.float32)
    wcat = jnp.concatenate([p["wi0"], p["wl"]], axis=0)        # (24, 32)
    bcat = p["bi0"] + p["bl"]                                  # (1, 32)
    slab = slab.at[R_WCAT:R_WCAT + N + LATENT, 0:HID_INIT].set(wcat)
    slab = slab.at[R_WIF:R_WIF + HID_INIT, 0:HIDDEN].set(p["wif"])
    slab = slab.at[R_WD0:R_WD0 + HIDDEN, 0:HIDDEN].set(p["wd0"])
    slab = slab.at[R_WD1:R_WD1 + HIDDEN, 0:HIDDEN].set(p["wd1"])
    slab = slab.at[R_WF0:R_WF0 + HIDDEN, 0:HID_FINAL].set(p["wf0"])
    slab = slab.at[R_WF1:R_WF1 + HID_FINAL, 0:MAX_N].set(p["wf1"])
    slab = slab.at[R_BIAS + 0, 0:HID_INIT].set(bcat[0])
    slab = slab.at[R_BIAS + 1, 0:HIDDEN].set(p["bif"][0])
    slab = slab.at[R_BIAS + 2, 0:HIDDEN].set(p["bd0"][0])
    slab = slab.at[R_BIAS + 3, 0:HIDDEN].set(p["bd1"][0])
    slab = slab.at[R_BIAS + 4, 0:HID_FINAL].set(p["bf0"][0])
    slab = slab.at[R_BIAS + 5, 0:MAX_N].set(p["bf1"][0])
    return slab


# ---------------- wrapper ----------------
def custom_decoder_forward(x, latent, slab):
    """x: (B, n, n) f32, latent: (B, latent_dim) f32, slab: packed weights
    -> (B, n, max_n)."""
    Bq, n, _ = x.shape
    rows = Bq * n

    # Per-call prologue: build the fused [x | latent] activation only.
    x2 = x.reshape(rows, n)
    lat2 = jnp.broadcast_to(latent[:, None, :], (Bq, n, LATENT)).reshape(rows, LATENT)
    xcat = jnp.concatenate([x2, lat2], axis=-1)                # (rows, n+LATENT)

    out = pl.pallas_call(
        decoder_kernel,
        out_shape=jax.ShapeDtypeStruct((rows, OUT_PAD), jnp.float32),
        grid=(1,),                                   # single step: all-VMEM resident
        in_specs=[pl.BlockSpec((rows, n + LATENT), lambda i: (0, 0)),
                  pl.BlockSpec((SLAB_ROWS, OUT_PAD), lambda i: (0, 0))],
        out_specs=pl.BlockSpec((rows, OUT_PAD), lambda i: (0, 0)),
        compiler_params=pltpu.CompilerParams(
            dimension_semantics=("arbitrary",)),
    )(xcat, slab)

    # TODO(synk): if a downstream consumer can read the (rows, 128) padded slab
    # directly, return `out` as-is and drop this slice+reshape copy.
    return out[:, :MAX_N].reshape(Bq, n, MAX_N)


# ---------------- pure-JAX reference (un-fused, original params) ----------------
def reference_forward(x, latent, p):
    lat = latent[:, None, :]
    h = x @ p["wi0"] + p["bi0"] + lat @ p["wl"] + p["bl"]
    h = jax.nn.relu(h) @ p["wif"] + p["bif"]
    h = jax.nn.relu(h)
    for wk, bk in (("wd0", "bd0"), ("wd1", "bd1")):
        out = jax.nn.relu(h @ p[wk] + p[bk])
        h = out + h
    f = h @ p["wf0"] + p["bf0"]
    return jax.nn.relu(f) @ p["wf1"] + p["bf1"]


if __name__ == "__main__":
    key = jax.random.PRNGKey(0)
    kx, kl, kp = jax.random.split(key, 3)
    x = jax.random.normal(kx, (B, N, N), jnp.float32)
    latent = jax.random.normal(kl, (B, LATENT), jnp.float32)
    params = init_params(kp)

    # Constant weight transforms done once, outside the per-call path.
    slab = jax.block_until_ready(pack_params(params))

    fwd = jax.jit(custom_decoder_forward)
    y = jax.block_until_ready(fwd(x, latent, slab))

    y_ref = reference_forward(x, latent, params)
    assert y.shape == (B, N, MAX_N)
    assert jnp.allclose(y, y_ref, atol=1e-5, rtol=1e-5)
    print("KERNEL_OK")
</pallas_src>

<mosaic_0001>
module attributes {stable_mosaic.version = 11 : i64} {
  func.func @decoder_kernel(%arg0: i32, %arg1: memref<16x24xf32, #tpu.memory_space<vmem>>, %arg2: memref<192x128xf32, #tpu.memory_space<vmem>>, %arg3: memref<16x128xf32, #tpu.memory_space<vmem>>) attributes {dimension_semantics = [#tpu.dimension_semantics<arbitrary>], iteration_bounds = array<i64: 1>, scalar_prefetch = 0 : i64, scratch_operands = 0 : i64, tpu.core_type = #tpu.core_type<tc>, window_params = [{pipeline_mode = #tpu.pipeline_mode<synchronous>, transform_indices = @transform_0, window_bounds = array<i64: 16, 24>}, {pipeline_mode = #tpu.pipeline_mode<synchronous>, transform_indices = @transform_1, window_bounds = array<i64: 192, 128>}, {pipeline_mode = #tpu.pipeline_mode<synchronous>, transform_indices = @transform_2, window_bounds = array<i64: 16, 128>}]} {
    %c0 = arith.constant 0 : index
    %c0_0 = arith.constant 0 : index
    %0 = vector.load %arg1[%c0, %c0_0] : memref<16x24xf32, #tpu.memory_space<vmem>>, vector<16x24xf32>
    %c184 = arith.constant 184 : index
    %c0_1 = arith.constant 0 : index
    %1 = vector.load %arg2[%c184, %c0_1] : memref<192x128xf32, #tpu.memory_space<vmem>>, vector<8x128xf32>
    %2 = vector.extract_strided_slice %1 {offsets = [0, 0], sizes = [1, 32], strides = [1, 1]} : vector<8x128xf32> to vector<1x32xf32>
    %3 = vector.extract_strided_slice %1 {offsets = [1, 0], sizes = [1, 32], strides = [1, 1]} : vector<8x128xf32> to vector<1x32xf32>
    %4 = vector.extract_strided_slice %1 {offsets = [2, 0], sizes = [1, 32], strides = [1, 1]} : vector<8x128xf32> to vector<1x32xf32>
    %5 = vector.extract_strided_slice %1 {offsets = [3, 0], sizes = [1, 32], strides = [1, 1]} : vector<8x128xf32> to vector<1x32xf32>
    %6 = vector.extract_strided_slice %1 {offsets = [4, 0], sizes = [1, 32], strides = [1, 1]} : vector<8x128xf32> to vector<1x32xf32>
    %7 = vector.extract_strided_slice %1 {offsets = [5, 0], sizes = [1, 128], strides = [1, 1]} : vector<8x128xf32> to vector<1x128xf32>
    %c0_2 = arith.constant 0 : index
    %c0_3 = arith.constant 0 : index
    %8 = vector.load %arg2[%c0_2, %c0_3] : memref<192x128xf32, #tpu.memory_space<vmem>>, vector<24x32xf32>
    %cst = arith.constant dense<0.000000e+00> : vector<16x32xf32>
    %9 = tpu.matmul %0, %8, %cst {dimension_numbers = #tpu.dot_dimension_numbers<[1], [0], [0], [1], [0, 0, 1, 1], [], []>} : vector<16x24xf32>, vector<24x32xf32>, vector<16x32xf32> -> vector<16x32xf32>
    %10 = vector.broadcast %2 : vector<1x32xf32> to vector<16x32xf32>
    %11 = arith.addf %9, %10 : vector<16x32xf32>
    %cst_4 = arith.constant 0.000000e+00 : f32
    %12 = vector.broadcast %cst_4 : f32 to vector<16x32xf32>
    %13 = arith.maximumf %11, %12 : vector<16x32xf32>
    %c24 = arith.constant 24 : index
    %c0_5 = arith.constant 0 : index
    %14 = vector.load %arg2[%c24, %c0_5] : memref<192x128xf32, #tpu.memory_space<vmem>>, vector<32x32xf32>
    %cst_6 = arith.constant dense<0.000000e+00> : vector<16x32xf32>
    %15 = tpu.matmul %13, %14, %cst_6 {dimension_numbers = #tpu.dot_dimension_numbers<[1], [0], [0], [1], [0, 0, 1, 1], [], []>} : vector<16x32xf32>, vector<32x32xf32>, vector<16x32xf32> -> vector<16x32xf32>
    %16 = vector.broadcast %3 : vector<1x32xf32> to vector<16x32xf32>
    %17 = arith.addf %15, %16 : vector<16x32xf32>
    %cst_7 = arith.constant 0.000000e+00 : f32
    %18 = vector.broadcast %cst_7 : f32 to vector<16x32xf32>
    %19 = arith.maximumf %17, %18 : vector<16x32xf32>
    %c56 = arith.constant 56 : index
    %c0_8 = arith.constant 0 : index
    %20 = vector.load %arg2[%c56, %c0_8] : memref<192x128xf32, #tpu.memory_space<vmem>>, vector<32x32xf32>
    %cst_9 = arith.constant dense<0.000000e+00> : vector<16x32xf32>
    %21 = tpu.matmul %19, %20, %cst_9 {dimension_numbers = #tpu.dot_dimension_numbers<[1], [0], [0], [1], [0, 0, 1, 1], [], []>} : vector<16x32xf32>, vector<32x32xf32>, vector<16x32xf32> -> vector<16x32xf32>
    %22 = vector.broadcast %4 : vector<1x32xf32> to vector<16x32xf32>
    %23 = arith.addf %21, %22 : vector<16x32xf32>
    %cst_10 = arith.constant 0.000000e+00 : f32
    %24 = vector.broadcast %cst_10 : f32 to vector<16x32xf32>
    %25 = arith.maximumf %23, %24 : vector<16x32xf32>
    %26 = arith.addf %25, %19 : vector<16x32xf32>
    %c88 = arith.constant 88 : index
    %c0_11 = arith.constant 0 : index
    %27 = vector.load %arg2[%c88, %c0_11] : memref<192x128xf32, #tpu.memory_space<vmem>>, vector<32x32xf32>
    %cst_12 = arith.constant dense<0.000000e+00> : vector<16x32xf32>
    %28 = tpu.matmul %26, %27, %cst_12 {dimension_numbers = #tpu.dot_dimension_numbers<[1], [0], [0], [1], [0, 0, 1, 1], [], []>} : vector<16x32xf32>, vector<32x32xf32>, vector<16x32xf32> -> vector<16x32xf32>
    %29 = vector.broadcast %5 : vector<1x32xf32> to vector<16x32xf32>
    %30 = arith.addf %28, %29 : vector<16x32xf32>
    %cst_13 = arith.constant 0.000000e+00 : f32
    %31 = vector.broadcast %cst_13 : f32 to vector<16x32xf32>
    %32 = arith.maximumf %30, %31 : vector<16x32xf32>
    %33 = arith.addf %32, %26 : vector<16x32xf32>
    %c120 = arith.constant 120 : index
    %c0_14 = arith.constant 0 : index
    %34 = vector.load %arg2[%c120, %c0_14] : memref<192x128xf32, #tpu.memory_space<vmem>>, vector<32x32xf32>
    %cst_15 = arith.constant dense<0.000000e+00> : vector<16x32xf32>
    %35 = tpu.matmul %33, %34, %cst_15 {dimension_numbers = #tpu.dot_dimension_numbers<[1], [0], [0], [1], [0, 0, 1, 1], [], []>} : vector<16x32xf32>, vector<32x32xf32>, vector<16x32xf32> -> vector<16x32xf32>
    %36 = vector.broadcast %6 : vector<1x32xf32> to vector<16x32xf32>
    %37 = arith.addf %35, %36 : vector<16x32xf32>
    %cst_16 = arith.constant 0.000000e+00 : f32
    %38 = vector.broadcast %cst_16 : f32 to vector<16x32xf32>
    %39 = arith.maximumf %37, %38 : vector<16x32xf32>
    %c152 = arith.constant 152 : index
    %c0_17 = arith.constant 0 : index
    %40 = vector.load %arg2[%c152, %c0_17] : memref<192x128xf32, #tpu.memory_space<vmem>>, vector<32x128xf32>
    %cst_18 = arith.constant dense<0.000000e+00> : vector<16x128xf32>
    %41 = tpu.matmul %39, %40, %cst_18 {dimension_numbers = #tpu.dot_dimension_numbers<[1], [0], [0], [1], [0, 0, 1, 1], [], []>} : vector<16x32xf32>, vector<32x128xf32>, vector<16x128xf32> -> vector<16x128xf32>
    %42 = vector.broadcast %7 : vector<1x128xf32> to vector<16x128xf32>
    %43 = arith.addf %41, %42 : vector<16x128xf32>
    %c0_19 = arith.constant 0 : index
    %c0_20 = arith.constant 0 : index
    %44 = vector.load %arg3[%c0_19, %c0_20] : memref<16x128xf32, #tpu.memory_space<vmem>>, vector<16x128xf32>
    tpu.vector_store %arg3[%c0_19, %c0_20], %43 {strides = array<i32>} : memref<16x128xf32, #tpu.memory_space<vmem>>, vector<16x128xf32>,
    return
  }
  func.func @transform_0(%arg0: i32) -> (i32, i32) {
    %c0_i32 = arith.constant 0 : i32
    %c0_i32_0 = arith.constant 0 : i32
    %c0_i32_1 = arith.constant 0 : i32
    return %c0_i32, %c0_i32_0 : i32, i32
  }
  func.func @transform_1(%arg0: i32) -> (i32, i32) {
    %c0_i32 = arith.constant 0 : i32
    %c0_i32_0 = arith.constant 0 : i32
    %c0_i32_1 = arith.constant 0 : i32
    return %c0_i32, %c0_i32_0 : i32, i32
  }
  func.func @transform_2(%arg0: i32) -> (i32, i32) {
    %c0_i32 = arith.constant 0 : i32
    %c0_i32_0 = arith.constant 0 : i32
    %c0_i32_1 = arith.constant 0 : i32
    return %c0_i32, %c0_i32_0 : i32, i32
  }
}

</mosaic_0001>

<llo_original>
// kernel: custom_decoder_forward.1
$region0: #{custom_decoder_forward.1}
  #allocation0 [shape = 'u32[]', space=smem, size = 0x4, offset = 0x4, fixed_abs, tag = 'smem constant byte address 0x4 - core index']
  #allocation1 [shape = 'u32[144,128]{1,0:T(1,128)}', space=vmem, size = 0x12000, scoped, tag = 'internal scratch']
  %s0 = inlined_call_operand.vmem [shape: f32[16,24], index: 0, kind: input, shape index: {}]
  %s1 = inlined_call_operand.hbm [shape: f32[192,128], index: 1, kind: input, shape index: {}]
  %s2 = inlined_call_operand.vmem [shape: f32[16,128], index: 2, kind: output, shape index: {}]
  %s3 = sld [smem:[#allocation0]]
  $region22: #{custom_decoder_forward.1} parent=0
    _
  %s5 = ssub.s32 1, %s3
  %s6 = scalar_select 0, %s5, %s3
  $region1: #{custom_decoder_forward.1} parent=0
    #allocation2 [shape = 'u8[98304]{0}', space=vmem, size = 0x18000, scoped, tag = 'input window, operand 1, single buffered']
    #allocation3 [shape = 's32[1]{0}', space=sflag, size = 0x4, scoped, tag = 'scoped memory for custom_decoder_forward.1']
    %7 = vsyncpa [#allocation3], 0
    // Predicated region
    $region2: #{custom_decoder_forward.1} parent=1 // pred_check
      _
    $region3: #{custom_decoder_forward.1} parent=1 // pred_check_branch
      %9 = sbr.rel (0) target = $region5
    $region4: #{custom_decoder_forward.1} parent=1 // pred_region
      _
    $region5: #{custom_decoder_forward.1} parent=1 // pred_fallthru
      _
    // Predicated region
    $region6: #{custom_decoder_forward.1} parent=1 // pred_check
      _
    $region7: #{custom_decoder_forward.1} parent=1 // pred_check_branch
      %11 = sbr.rel (0) target = $region9
    $region8: #{custom_decoder_forward.1} parent=1 // pred_region
      %s13 = ssub.s32 3072, 3072
      %14 = vsyncadd [#allocation3], %s13
      %s15 = sshll.u32 [#allocation2], 4
      %s16 = int_to_ptr.vmem [resolvable:$true] %s15
      %21 = dma.hbm_to_vmem [thread:$0]  %s1, 3072, %s16, [#allocation3], 128, 128, 8
    $region9: #{custom_decoder_forward.1} parent=1 // pred_fallthru
      _
    // Predicated region
    $region10: #{custom_decoder_forward.1} parent=1 // pred_check
      _
    $region11: #{custom_decoder_forward.1} parent=1 // pred_check_branch
      %23 = sbr.rel (0) target = $region13
    $region12: #{custom_decoder_forward.1} parent=1 // pred_region
      %24 = dma.done [#allocation3], 3072
    $region13: #{custom_decoder_forward.1} parent=1 // pred_fallthru
      _
    %v25 = vld [vmem:[%s0] sm:$0xff]
    %v26 = vld [vmem:[%s0 + $0x8] sm:$0xff]
    %v27 = vld [vmem:[#allocation2 + $0xb8] sm:$0xff]
    %v28 = vld [vmem:[#allocation2] sm:$0xff]
    %v29 = vld [vmem:[#allocation2 + $0x8] sm:$0xff]
    %v30 = vld [vmem:[#allocation2 + $0x10] sm:$0xff]
    %v31 = vlaneseq
    %v32 = vshrl.u32 %v31, 7
    %v33 = vsub.s32 0, %v32
    %v34 = vrot.slane %v27, %v33
    %vm35 = vcmask 195584
    %v37 = vsel %vm35, %v25, 0
    %v40 = vsel %vm35, %v26, 0
    %42 = vmatprep.subr.mxu0 0.0
    %43 = vmatpush1.msra.mxu0 0.0
    %44 = vmatprep.subr.mxu0 0.0
    %45 = vmatpush1.msra.mxu0 0.0
    %46 = vmatprep.subr.mxu0 0.0
    %47 = vmatpush1.msra.mxu0 0.0
    %48 = vmatprep.subr.mxu0 0.0
    %49 = vmatpush1.msra.mxu0 0.0
    %50 = vmatprep.subr.mxu0 0.0
    %51 = vmatpush1.msra.mxu0 0.0
    %52 = vmatprep.subr.mxu0 0.0
    %53 = vmatpush1.msra.mxu0 0.0
    %54 = vmatprep.subr.mxu0 0.0
    %55 = vmatpush1.msra.mxu0 0.0
    %56 = vmatprep.subr.mxu0 0.0
    %57 = vmatpush1.msra.mxu0 0.0
    %58 = vmatprep.subr.mxu0 0.0
    %59 = vmatpush1.msra.mxu0 0.0
    %60 = vmatprep.subr.mxu0 0.0
    %61 = vmatpush1.msra.mxu0 0.0
    %62 = vmatprep.subr.mxu0 0.0
    %63 = vmatpush1.msra.mxu0 0.0
    %64 = vmatprep.subr.mxu0 0.0
    %65 = vmatpush1.msra.mxu0 0.0
    %66 = vmatprep.subr.mxu0 0.0
    %67 = vmatpush1.msra.mxu0 0.0
    %68 = vmatprep.subr.mxu0 0.0
    %69 = vmatpush1.msra.mxu0 %v30
    %70 = vmatprep.subr.mxu0 0.0
    %71 = vmatpush1.msra.mxu0 %v29
    %72 = vmatprep.subr.mxu0 0.0
    %73 = vmatpush1.msra.mxu0 %v28
    %74 = vmatprep.subr.mxu0 0.0
    %75 = vmatpush2.msra.mxu0 0.0
    %76 = vmatprep.subr.mxu0 0.0
    %77 = vmatpush2.msra.mxu0 0.0
    %78 = vmatprep.subr.mxu0 0.0
    %79 = vmatpush2.msra.mxu0 0.0
    %80 = vmatprep.subr.mxu0 0.0
    %81 = vmatpush2.msra.mxu0 0.0
    %82 = vmatprep.subr.mxu0 0.0
    %83 = vmatpush2.msra.mxu0 0.0
    %84 = vmatprep.subr.mxu0 0.0
    %85 = vmatpush2.msra.mxu0 0.0
    %86 = vmatprep.subr.mxu0 0.0
    %87 = vmatpush2.msra.mxu0 0.0
    %88 = vmatprep.subr.mxu0 0.0
    %89 = vmatpush2.msra.mxu0 0.0
    %90 = vmatprep.subr.mxu0 0.0
    %91 = vmatpush2.msra.mxu0 0.0
    %92 = vmatprep.subr.mxu0 0.0
    %93 = vmatpush2.msra.mxu0 0.0
    %94 = vmatprep.subr.mxu0 0.0
    %95 = vmatpush2.msra.mxu0 0.0
    %96 = vmatprep.subr.mxu0 0.0
    %97 = vmatpush2.msra.mxu0 0.0
    %98 = vmatprep.subr.mxu0 0.0
    %99 = vmatpush2.msra.mxu0 0.0
    %100 = vmatprep.subr.mxu0 0.0
    %101 = vmatpush2.msra.mxu0 0.0
    %102 = vmatprep.subr.mxu0 0.0
    %103 = vmatpush2.msra.mxu0 0.0
    %104 = vmatprep.subr.mxu0 0.0
    %105 = vmatpush2.msra.mxu0 0.0
    %106 = vmatprep.mubr.f32.mxu0 0.0
    %107 = vmatmul.mubr.f32.gmra.mxu0 %v37
    %v108 = vpop.f32.mrf.mxu0
    %v109 = vadd.f32 %v34, %v108
    %v110 = vpop.f32.mrf.mxu0
    %111 = vmatprep.mubr.f32.mxu0 0.0
    %112 = vmatmul.mubr.f32.gmra.mxu0 %v40
    %v113 = vpop.f32.mrf.mxu0
    %v114 = vadd.f32 %v34, %v113
    %v115 = vpop.f32.mrf.mxu0
    %116 = vdwg.mxu0
    %v117 = vmax.f32 %v109, 0.0
    %v118 = vmax.f32 %v114, 0.0
    %v119 = vld [vmem:[#allocation2 + $0x18] sm:$0xff]
    %v120 = vld [vmem:[#allocation2 + $0x20] sm:$0xff]
    %v121 = vld [vmem:[#allocation2 + $0x28] sm:$0xff]
    %v122 = vld [vmem:[#allocation2 + $0x30] sm:$0xff]
    %v123 = vlaneseq
    %v124 = vshrl.u32 %v123, 7
    %v125 = vsub.s32 1, %v124
    %v126 = vrot.slane %v27, %v125
    %vm127 = vcmask 261120
    %v129 = vsel %vm127, %v117, 0
    %v132 = vsel %vm127, %v118, 0
    %134 = vmatprep.subr.mxu0 0.0
    %135 = vmatpush1.msra.mxu0 0.0
    %136 = vmatprep.subr.mxu0 0.0
    %137 = vmatpush1.msra.mxu0 0.0
    %138 = vmatprep.subr.mxu0 0.0
    %139 = vmatpush1.msra.mxu0 0.0
    %140 = vmatprep.subr.mxu0 0.0
    %141 = vmatpush1.msra.mxu0 0.0
    %142 = vmatprep.subr.mxu0 0.0
    %143 = vmatpush1.msra.mxu0 0.0
    %144 = vmatprep.subr.mxu0 0.0
    %145 = vmatpush1.msra.mxu0 0.0
    %146 = vmatprep.subr.mxu0 0.0
    %147 = vmatpush1.msra.mxu0 0.0
    %148 = vmatprep.subr.mxu0 0.0
    %149 = vmatpush1.msra.mxu0 0.0
    %150 = vmatprep.subr.mxu0 0.0
    %151 = vmatpush1.msra.mxu0 0.0
    %152 = vmatprep.subr.mxu0 0.0
    %153 = vmatpush1.msra.mxu0 0.0
    %154 = vmatprep.subr.mxu0 0.0
    %155 = vmatpush1.msra.mxu0 0.0
    %156 = vmatprep.subr.mxu0 0.0
    %157 = vmatpush1.msra.mxu0 0.0
    %158 = vmatprep.subr.mxu0 0.0
    %159 = vmatpush1.msra.mxu0 %v122
    %160 = vmatprep.subr.mxu0 0.0
    %161 = vmatpush1.msra.mxu0 %v121
    %162 = vmatprep.subr.mxu0 0.0
    %163 = vmatpush1.msra.mxu0 %v120
    %164 = vmatprep.subr.mxu0 0.0
    %165 = vmatpush1.msra.mxu0 %v119
    %166 = vmatprep.subr.mxu0 0.0
    %167 = vmatpush2.msra.mxu0 0.0
    %168 = vmatprep.subr.mxu0 0.0
    %169 = vmatpush2.msra.mxu0 0.0
    %170 = vmatprep.subr.mxu0 0.0
    %171 = vmatpush2.msra.mxu0 0.0
    %172 = vmatprep.subr.mxu0 0.0
    %173 = vmatpush2.msra.mxu0 0.0
    %174 = vmatprep.subr.mxu0 0.0
    %175 = vmatpush2.msra.mxu0 0.0
    %176 = vmatprep.subr.mxu0 0.0
    %177 = vmatpush2.msra.mxu0 0.0
    %178 = vmatprep.subr.mxu0 0.0
    %179 = vmatpush2.msra.mxu0 0.0
    %180 = vmatprep.subr.mxu0 0.0
    %181 = vmatpush2.msra.mxu0 0.0
    %182 = vmatprep.subr.mxu0 0.0
    %183 = vmatpush2.msra.mxu0 0.0
    %184 = vmatprep.subr.mxu0 0.0
    %185 = vmatpush2.msra.mxu0 0.0
    %186 = vmatprep.subr.mxu0 0.0
    %187 = vmatpush2.msra.mxu0 0.0
    %188 = vmatprep.subr.mxu0 0.0
    %189 = vmatpush2.msra.mxu0 0.0
    %190 = vmatprep.subr.mxu0 0.0
    %191 = vmatpush2.msra.mxu0 0.0
    %192 = vmatprep.subr.mxu0 0.0
    %193 = vmatpush2.msra.mxu0 0.0
    %194 = vmatprep.subr.mxu0 0.0
    %195 = vmatpush2.msra.mxu0 0.0
    %196 = vmatprep.subr.mxu0 0.0
    %197 = vmatpush2.msra.mxu0 0.0
    %198 = vmatprep.mubr.f32.mxu0 0.0
    %199 = vmatmul.mubr.f32.gmra.mxu0 %v129
    %v200 = vpop.f32.mrf.mxu0
    %v201 = vadd.f32 %v126, %v200
    %v202 = vpop.f32.mrf.mxu0
    %203 = vmatprep.mubr.f32.mxu0 0.0
    %204 = vmatmul.mubr.f32.gmra.mxu0 %v132
    %v205 = vpop.f32.mrf.mxu0
    %v206 = vadd.f32 %v126, %v205
    %v207 = vpop.f32.mrf.mxu0
    %208 = vdwg.mxu0
    %v209 = vmax.f32 %v201, 0.0
    %v210 = vmax.f32 %v206, 0.0
    %v211 = vld [vmem:[#allocation2 + $0x38] sm:$0xff]
    %v212 = vld [vmem:[#allocation2 + $0x40] sm:$0xff]
    %v213 = vld [vmem:[#allocation2 + $0x48] sm:$0xff]
    %v214 = vld [vmem:[#allocation2 + $0x50] sm:$0xff]
    %v215 = vlaneseq
    %v216 = vshrl.u32 %v215, 7
    %v217 = vsub.s32 2, %v216
    %v218 = vrot.slane %v27, %v217
    %v220 = vsel %vm127, %v209, 0
    %v223 = vsel %vm127, %v210, 0
    %225 = vmatprep.subr.mxu0 0.0
    %226 = vmatpush1.msra.mxu0 0.0
    %227 = vmatprep.subr.mxu0 0.0
    %228 = vmatpush1.msra.mxu0 0.0
    %229 = vmatprep.subr.mxu0 0.0
    %230 = vmatpush1.msra.mxu0 0.0
    %231 = vmatprep.subr.mxu0 0.0
    %232 = vmatpush1.msra.mxu0 0.0
    %233 = vmatprep.subr.mxu0 0.0
    %234 = vmatpush1.msra.mxu0 0.0
    %235 = vmatprep.subr.mxu0 0.0
    %236 = vmatpush1.msra.mxu0 0.0
    %237 = vmatprep.subr.mxu0 0.0
    %238 = vmatpush1.msra.mxu0 0.0
    %239 = vmatprep.subr.mxu0 0.0
    %240 = vmatpush1.msra.mxu0 0.0
    %241 = vmatprep.subr.mxu0 0.0
    %242 = vmatpush1.msra.mxu0 0.0
    %243 = vmatprep.subr.mxu0 0.0
    %244 = vmatpush1.msra.mxu0 0.0
    %245 = vmatprep.subr.mxu0 0.0
    %246 = vmatpush1.msra.mxu0 0.0
    %247 = vmatprep.subr.mxu0 0.0
    %248 = vmatpush1.msra.mxu0 0.0
    %249 = vmatprep.subr.mxu0 0.0
    %250 = vmatpush1.msra.mxu0 %v214
    %251 = vmatprep.subr.mxu0 0.0
    %252 = vmatpush1.msra.mxu0 %v213
    %253 = vmatprep.subr.mxu0 0.0
    %254 = vmatpush1.msra.mxu0 %v212
    %255 = vmatprep.subr.mxu0 0.0
    %256 = vmatpush1.msra.mxu0 %v211
    %257 = vmatprep.subr.mxu0 0.0
    %258 = vmatpush2.msra.mxu0 0.0
    %259 = vmatprep.subr.mxu0 0.0
    %260 = vmatpush2.msra.mxu0 0.0
    %261 = vmatprep.subr.mxu0 0.0
    %262 = vmatpush2.msra.mxu0 0.0
    %263 = vmatprep.subr.mxu0 0.0
    %264 = vmatpush2.msra.mxu0 0.0
    %265 = vmatprep.subr.mxu0 0.0
    %266 = vmatpush2.msra.mxu0 0.0
    %267 = vmatprep.subr.mxu0 0.0
    %268 = vmatpush2.msra.mxu0 0.0
    %269 = vmatprep.subr.mxu0 0.0
    %270 = vmatpush2.msra.mxu0 0.0
    %271 = vmatprep.subr.mxu0 0.0
    %272 = vmatpush2.msra.mxu0 0.0
    %273 = vmatprep.subr.mxu0 0.0
    %274 = vmatpush2.msra.mxu0 0.0
    %275 = vmatprep.subr.mxu0 0.0
    %276 = vmatpush2.msra.mxu0 0.0
    %277 = vmatprep.subr.mxu0 0.0
    %278 = vmatpush2.msra.mxu0 0.0
    %279 = vmatprep.subr.mxu0 0.0
    %280 = vmatpush2.msra.mxu0 0.0
    %281 = vmatprep.subr.mxu0 0.0
    %282 = vmatpush2.msra.mxu0 0.0
    %283 = vmatprep.subr.mxu0 0.0
    %284 = vmatpush2.msra.mxu0 0.0
    %285 = vmatprep.subr.mxu0 0.0
    %286 = vmatpush2.msra.mxu0 0.0
    %287 = vmatprep.subr.mxu0 0.0
    %288 = vmatpush2.msra.mxu0 0.0
    %289 = vmatprep.mubr.f32.mxu0 0.0
    %290 = vmatmul.mubr.f32.gmra.mxu0 %v220
    %v291 = vpop.f32.mrf.mxu0
    %v292 = vadd.f32 %v218, %v291
    %v293 = vpop.f32.mrf.mxu0
    %294 = vmatprep.mubr.f32.mxu0 0.0
    %295 = vmatmul.mubr.f32.gmra.mxu0 %v223
    %v296 = vpop.f32.mrf.mxu0
    %v297 = vadd.f32 %v218, %v296
    %v298 = vpop.f32.mrf.mxu0
    %299 = vdwg.mxu0
    %v300 = vmax.f32 %v292, 0.0
    %v301 = vmax.f32 %v297, 0.0
    %v302 = vadd.f32 %v300, %v209
    %v303 = vadd.f32 %v301, %v210
    %v304 = vld [vmem:[#allocation2 + $0x58] sm:$0xff]
    %v305 = vld [vmem:[#allocation2 + $0x60] sm:$0xff]
    %v306 = vld [vmem:[#allocation2 + $0x68] sm:$0xff]
    %v307 = vld [vmem:[#allocation2 + $0x70] sm:$0xff]
    %v308 = vlaneseq
    %v309 = vshrl.u32 %v308, 7
    %v310 = vsub.s32 3, %v309
    %v311 = vrot.slane %v27, %v310
    %v313 = vsel %vm127, %v302, 0
    %v316 = vsel %vm127, %v303, 0
    %318 = vmatprep.subr.mxu0 0.0
    %319 = vmatpush1.msra.mxu0 0.0
    %320 = vmatprep.subr.mxu0 0.0
    %321 = vmatpush1.msra.mxu0 0.0
    %322 = vmatprep.subr.mxu0 0.0
    %323 = vmatpush1.msra.mxu0 0.0
    %324 = vmatprep.subr.mxu0 0.0
    %325 = vmatpush1.msra.mxu0 0.0
    %326 = vmatprep.subr.mxu0 0.0
    %327 = vmatpush1.msra.mxu0 0.0
    %328 = vmatprep.subr.mxu0 0.0
    %329 = vmatpush1.msra.mxu0 0.0
    %330 = vmatprep.subr.mxu0 0.0
    %331 = vmatpush1.msra.mxu0 0.0
    %332 = vmatprep.subr.mxu0 0.0
    %333 = vmatpush1.msra.mxu0 0.0
    %334 = vmatprep.subr.mxu0 0.0
    %335 = vmatpush1.msra.mxu0 0.0
    %336 = vmatprep.subr.mxu0 0.0
    %337 = vmatpush1.msra.mxu0 0.0
    %338 = vmatprep.subr.mxu0 0.0
    %339 = vmatpush1.msra.mxu0 0.0
    %340 = vmatprep.subr.mxu0 0.0
    %341 = vmatpush1.msra.mxu0 0.0
    %342 = vmatprep.subr.mxu0 0.0
    %343 = vmatpush1.msra.mxu0 %v307
    %344 = vmatprep.subr.mxu0 0.0
    %345 = vmatpush1.msra.mxu0 %v306
    %346 = vmatprep.subr.mxu0 0.0
    %347 = vmatpush1.msra.mxu0 %v305
    %348 = vmatprep.subr.mxu0 0.0
    %349 = vmatpush1.msra.mxu0 %v304
    %350 = vmatprep.subr.mxu0 0.0
    %351 = vmatpush2.msra.mxu0 0.0
    %352 = vmatprep.subr.mxu0 0.0
    %353 = vmatpush2.msra.mxu0 0.0
    %354 = vmatprep.subr.mxu0 0.0
    %355 = vmatpush2.msra.mxu0 0.0
    %356 = vmatprep.subr.mxu0 0.0
    %357 = vmatpush2.msra.mxu0 0.0
    %358 = vmatprep.subr.mxu0 0.0
    %359 = vmatpush2.msra.mxu0 0.0
    %360 = vmatprep.subr.mxu0 0.0
    %361 = vmatpush2.msra.mxu0 0.0
    %362 = vmatprep.subr.mxu0 0.0
    %363 = vmatpush2.msra.mxu0 0.0
    %364 = vmatprep.subr.mxu0 0.0
    %365 = vmatpush2.msra.mxu0 0.0
    %366 = vmatprep.subr.mxu0 0.0
    %367 = vmatpush2.msra.mxu0 0.0
    %368 = vmatprep.subr.mxu0 0.0
    %369 = vmatpush2.msra.mxu0 0.0
    %370 = vmatprep.subr.mxu0 0.0
    %371 = vmatpush2.msra.mxu0 0.0
    %372 = vmatprep.subr.mxu0 0.0
    %373 = vmatpush2.msra.mxu0 0.0
    %374 = vmatprep.subr.mxu0 0.0
    %375 = vmatpush2.msra.mxu0 0.0
    %376 = vmatprep.subr.mxu0 0.0
    %377 = vmatpush2.msra.mxu0 0.0
    %378 = vmatprep.subr.mxu0 0.0
    %379 = vmatpush2.msra.mxu0 0.0
    %380 = vmatprep.subr.mxu0 0.0
    %381 = vmatpush2.msra.mxu0 0.0
    %382 = vmatprep.mubr.f32.mxu0 0.0
    %383 = vmatmul.mubr.f32.gmra.mxu0 %v313
    %v384 = vpop.f32.mrf.mxu0
    %v385 = vadd.f32 %v311, %v384
    %v386 = vpop.f32.mrf.mxu0
    %387 = vmatprep.mubr.f32.mxu0 0.0
    %388 = vmatmul.mubr.f32.gmra.mxu0 %v316
    %v389 = vpop.f32.mrf.mxu0
    %v390 = vadd.f32 %v311, %v389
    %v391 = vpop.f32.mrf.mxu0
    %392 = vdwg.mxu0
    %v393 = vmax.f32 %v385, 0.0
    %v394 = vmax.f32 %v390, 0.0
    %v395 = vadd.f32 %v393, %v302
    %v396 = vadd.f32 %v394, %v303
    %v397 = vld [vmem:[#allocation2 + $0x78] sm:$0xff]
    %v398 = vld [vmem:[#allocation2 + $0x80] sm:$0xff]
    %v399 = vld [vmem:[#allocation2 + $0x88] sm:$0xff]
    %v400 = vld [vmem:[#allocation2 + $0x90] sm:$0xff]
    %v401 = vlaneseq
    %v402 = vshrl.u32 %v401, 7
    %v403 = vsub.s32 4, %v402
    %v404 = vrot.slane %v27, %v403
    %v406 = vsel %vm127, %v395, 0
    %v409 = vsel %vm127, %v396, 0
    %411 = vmatprep.subr.mxu0 0.0
    %412 = vmatpush1.msra.mxu0 0.0
    %413 = vmatprep.subr.mxu0 0.0
    %414 = vmatpush1.msra.mxu0 0.0
    %415 = vmatprep.subr.mxu0 0.0
    %416 = vmatpush1.msra.mxu0 0.0
    %417 = vmatprep.subr.mxu0 0.0
    %418 = vmatpush1.msra.mxu0 0.0
    %419 = vmatprep.subr.mxu0 0.0
    %420 = vmatpush1.msra.mxu0 0.0
    %421 = vmatprep.subr.mxu0 0.0
    %422 = vmatpush1.msra.mxu0 0.0
    %423 = vmatprep.subr.mxu0 0.0
    %424 = vmatpush1.msra.mxu0 0.0
    %425 = vmatprep.subr.mxu0 0.0
    %426 = vmatpush1.msra.mxu0 0.0
    %427 = vmatprep.subr.mxu0 0.0
    %428 = vmatpush1.msra.mxu0 0.0
    %429 = vmatprep.subr.mxu0 0.0
    %430 = vmatpush1.msra.mxu0 0.0
    %431 = vmatprep.subr.mxu0 0.0
    %432 = vmatpush1.msra.mxu0 0.0
    %433 = vmatprep.subr.mxu0 0.0
    %434 = vmatpush1.msra.mxu0 0.0
    %435 = vmatprep.subr.mxu0 0.0
    %436 = vmatpush1.msra.mxu0 %v400
    %437 = vmatprep.subr.mxu0 0.0
    %438 = vmatpush1.msra.mxu0 %v399
    %439 = vmatprep.subr.mxu0 0.0
    %440 = vmatpush1.msra.mxu0 %v398
    %441 = vmatprep.subr.mxu0 0.0
    %442 = vmatpush1.msra.mxu0 %v397
    %443 = vmatprep.subr.mxu0 0.0
    %444 = vmatpush2.msra.mxu0 0.0
    %445 = vmatprep.subr.mxu0 0.0
    %446 = vmatpush2.msra.mxu0 0.0
    %447 = vmatprep.subr.mxu0 0.0
    %448 = vmatpush2.msra.mxu0 0.0
    %449 = vmatprep.subr.mxu0 0.0
    %450 = vmatpush2.msra.mxu0 0.0
    %451 = vmatprep.subr.mxu0 0.0
    %452 = vmatpush2.msra.mxu0 0.0
    %453 = vmatprep.subr.mxu0 0.0
    %454 = vmatpush2.msra.mxu0 0.0
    %455 = vmatprep.subr.mxu0 0.0
    %456 = vmatpush2.msra.mxu0 0.0
    %457 = vmatprep.subr.mxu0 0.0
    %458 = vmatpush2.msra.mxu0 0.0
    %459 = vmatprep.subr.mxu0 0.0
    %460 = vmatpush2.msra.mxu0 0.0
    %461 = vmatprep.subr.mxu0 0.0
    %462 = vmatpush2.msra.mxu0 0.0
    %463 = vmatprep.subr.mxu0 0.0
    %464 = vmatpush2.msra.mxu0 0.0
    %465 = vmatprep.subr.mxu0 0.0
    %466 = vmatpush2.msra.mxu0 0.0
    %467 = vmatprep.subr.mxu0 0.0
    %468 = vmatpush2.msra.mxu0 0.0
    %469 = vmatprep.subr.mxu0 0.0
    %470 = vmatpush2.msra.mxu0 0.0
    %471 = vmatprep.subr.mxu0 0.0
    %472 = vmatpush2.msra.mxu0 0.0
    %473 = vmatprep.subr.mxu0 0.0
    %474 = vmatpush2.msra.mxu0 0.0
    %475 = vmatprep.mubr.f32.mxu0 0.0
    %476 = vmatmul.mubr.f32.gmra.mxu0 %v406
    %v477 = vpop.f32.mrf.mxu0
    %v478 = vadd.f32 %v404, %v477
    %v479 = vpop.f32.mrf.mxu0
    %480 = vmatprep.mubr.f32.mxu0 0.0
    %481 = vmatmul.mubr.f32.gmra.mxu0 %v409
    %v482 = vpop.f32.mrf.mxu0
    %v483 = vadd.f32 %v404, %v482
    %v484 = vpop.f32.mrf.mxu0
    %485 = vdwg.mxu0
    %v486 = vmax.f32 %v478, 0.0
    %v487 = vmax.f32 %v483, 0.0
    %v488 = vld [vmem:[#allocation2 + $0x98] sm:$0xff]
    %v489 = vld [vmem:[#allocation2 + $0xa0] sm:$0xff]
    %v490 = vld [vmem:[#allocation2 + $0xa8] sm:$0xff]
    %v491 = vld [vmem:[#allocation2 + $0xb0] sm:$0xff]
    %v492 = vlaneseq
    %v493 = vshrl.u32 %v492, 7
    %v494 = vsub.s32 5, %v493
    %v495 = vrot.slane %v27, %v494
    %v497 = vsel %vm127, %v486, 0
    %v500 = vsel %vm127, %v487, 0
    %502 = vmatprep.subr.mxu0 0.0
    %503 = vmatpush1.msra.mxu0 0.0
    %504 = vmatprep.subr.mxu0 0.0
    %505 = vmatpush1.msra.mxu0 0.0
    %506 = vmatprep.subr.mxu0 0.0
    %507 = vmatpush1.msra.mxu0 0.0
    %508 = vmatprep.subr.mxu0 0.0
    %509 = vmatpush1.msra.mxu0 0.0
    %510 = vmatprep.subr.mxu0 0.0
    %511 = vmatpush1.msra.mxu0 0.0
    %512 = vmatprep.subr.mxu0 0.0
    %513 = vmatpush1.msra.mxu0 0.0
    %514 = vmatprep.subr.mxu0 0.0
    %515 = vmatpush1.msra.mxu0 0.0
    %516 = vmatprep.subr.mxu0 0.0
    %517 = vmatpush1.msra.mxu0 0.0
    %518 = vmatprep.subr.mxu0 0.0
    %519 = vmatpush1.msra.mxu0 0.0
    %520 = vmatprep.subr.mxu0 0.0
    %521 = vmatpush1.msra.mxu0 0.0
    %522 = vmatprep.subr.mxu0 0.0
    %523 = vmatpush1.msra.mxu0 0.0
    %524 = vmatprep.subr.mxu0 0.0
    %525 = vmatpush1.msra.mxu0 0.0
    %526 = vmatprep.subr.mxu0 0.0
    %527 = vmatpush1.msra.mxu0 %v491
    %528 = vmatprep.subr.mxu0 0.0
    %529 = vmatpush1.msra.mxu0 %v490
    %530 = vmatprep.subr.mxu0 0.0
    %531 = vmatpush1.msra.mxu0 %v489
    %532 = vmatprep.subr.mxu0 0.0
    %533 = vmatpush1.msra.mxu0 %v488
    %534 = vmatprep.subr.mxu0 0.0
    %535 = vmatpush2.msra.mxu0 0.0
    %536 = vmatprep.subr.mxu0 0.0
    %537 = vmatpush2.msra.mxu0 0.0
    %538 = vmatprep.subr.mxu0 0.0
    %539 = vmatpush2.msra.mxu0 0.0
    %540 = vmatprep.subr.mxu0 0.0
    %541 = vmatpush2.msra.mxu0 0.0
    %542 = vmatprep.subr.mxu0 0.0
    %543 = vmatpush2.msra.mxu0 0.0
    %544 = vmatprep.subr.mxu0 0.0
    %545 = vmatpush2.msra.mxu0 0.0
    %546 = vmatprep.subr.mxu0 0.0
    %547 = vmatpush2.msra.mxu0 0.0
    %548 = vmatprep.subr.mxu0 0.0
    %549 = vmatpush2.msra.mxu0 0.0
    %550 = vmatprep.subr.mxu0 0.0
    %551 = vmatpush2.msra.mxu0 0.0
    %552 = vmatprep.subr.mxu0 0.0
    %553 = vmatpush2.msra.mxu0 0.0
    %554 = vmatprep.subr.mxu0 0.0
    %555 = vmatpush2.msra.mxu0 0.0
    %556 = vmatprep.subr.mxu0 0.0
    %557 = vmatpush2.msra.mxu0 0.0
    %558 = vmatprep.subr.mxu0 0.0
    %559 = vmatpush2.msra.mxu0 0.0
    %560 = vmatprep.subr.mxu0 0.0
    %561 = vmatpush2.msra.mxu0 0.0
    %562 = vmatprep.subr.mxu0 0.0
    %563 = vmatpush2.msra.mxu0 0.0
    %564 = vmatprep.subr.mxu0 0.0
    %565 = vmatpush2.msra.mxu0 0.0
    %566 = vmatprep.mubr.f32.mxu0 0.0
    %567 = vmatmul.mubr.f32.gmra.mxu0 %v497
    %v568 = vpop.f32.mrf.mxu0
    %v569 = vadd.f32 %v495, %v568
    %v570 = vpop.f32.mrf.mxu0
    %571 = vmatprep.mubr.f32.mxu0 0.0
    %572 = vmatmul.mubr.f32.gmra.mxu0 %v500
    %v573 = vpop.f32.mrf.mxu0
    %v574 = vadd.f32 %v495, %v573
    %v575 = vpop.f32.mrf.mxu0
    %576 = vdwg.mxu0
    %577 = vst [vmem:[%s2] sm:$0xff] %v569
    %578 = vst [vmem:[%s2 + $0x8] sm:$0xff] %v574
    // Predicated region
    $region14: #{custom_decoder_forward.1} parent=1 // pred_check
      _
    $region15: #{custom_decoder_forward.1} parent=1 // pred_check_branch
      %580 = sbr.rel (0) target = $region17
    $region16: #{custom_decoder_forward.1} parent=1 // pred_region
      _
    $region17: #{custom_decoder_forward.1} parent=1 // pred_fallthru
      _
    // Predicated region
    $region18: #{custom_decoder_forward.1} parent=1 // pred_check
      _
    $region19: #{custom_decoder_forward.1} parent=1 // pred_check_branch
      %582 = sbr.rel (0) target = $region21
    $region20: #{custom_decoder_forward.1} parent=1 // pred_region
      _
    $region21: #{custom_decoder_forward.1} parent=1 // pred_fallthru
      _
    %583 = vsyncpa [#allocation3], 1

</llo_original>
